<compile_context>
chip_gen: v5e
topology: v5e:2x2
jax: 0.10.0
libtpu: 0.0.40
codegen_flags: <defaults>
</compile_context>

<pallas_src>
import numpy as np
import jax
import jax.numpy as jnp
from jax.experimental import pallas as pl
from jax.experimental.pallas import tpu as pltpu

# ---- deterministic synthetic experiment settings ----------------------------
EXP_SETTINGS = dict(
    mixup_layer="conv_linear_include_last",
    mix_prob=1.0,                  # host-side Bernoulli (torch.rand(1).item() <= prob)
    channelwise=True,
    mix_upper_bound_feature=0.7,
    mix_lower_bound_feature=0.3,
    shuffle_image_feature="SelfShuffle",
    blending_mode_feature="M",
    mixed_image_type_feature="A",
    divisor=1,
    ftm_beta=0.5,
)


# ---------------------------- Pallas kernels ---------------------------------
def _ftm_scale(yn, tn, beta):
    """beta * ||y|| / (||t|| + 1e-7) as a (1,1) f32.

    Exact divide (per review): one scalar per sample, so approx reciprocal buys
    zero cycles and only costs accuracy.
    """
    out_nsq = jnp.sum(yn * yn, keepdims=True)            # (1, 1)
    tun_nsq = jnp.sum(tn * tn, keepdims=True)            # (1, 1)
    return beta * jnp.sqrt(out_nsq) / (jnp.sqrt(tun_nsq) + 1e-7)


def _make_fused_kernel(N, beta, mode):
    """mode: 'mix' (hook + mixing triggered), 'perturb' (hook, not triggered),
    'conv' (hook inactive).  N is small and static -> loops fully unrolled."""

    def _conv_sample(x_n, w_ref, b_ref):
        # per-sample MXU matmul: (C_out, C_in) x (C_in, HW) + bias
        y = jnp.dot(w_ref[...], x_n, preferred_element_type=jnp.float32)
        return y + b_ref[...].astype(jnp.float32)        # (C_out, HW)

    if mode == "conv":
        def kernel(x_ref, w_ref, b_ref, o_ref):
            for n in range(N):                           # static, unrolled
                o_ref[n] = _conv_sample(x_ref[n], w_ref, b_ref).astype(o_ref.dtype)
        return kernel

    if mode == "perturb":
        def kernel(x_ref, w_ref, b_ref, t_ref, o_ref):
            for n in range(N):
                yn = _conv_sample(x_ref[n], w_ref, b_ref)
                tn = t_ref[n].astype(jnp.float32)
                o_ref[n] = (yn + tn * _ftm_scale(yn, tn, beta)).astype(o_ref.dtype)
        return kernel

    def kernel(perm_ref, x_ref, w_ref, b_ref, t_ref, a_ref, o_ref):
        # perm_ref: (N,) int32 in SMEM (unchecked dynamic VMEM index: fine for a
        # jax.random.permutation; add pl.debug_check under enable_debug_checks
        # if perm can come from untrusted code).
        for n in range(N):
            yn = _conv_sample(x_ref[n], w_ref, b_ref)    # (C_out, HW)
            tn = t_ref[n].astype(jnp.float32)
            out1 = yn + tn * _ftm_scale(yn, tn, beta)
            # SelfShuffle 'prev' (type 'A' => y of the permuted sample): RECOMPUTE
            # from VMEM-resident x instead of keeping a (N,C_out,HW) scratch.
            prev = _conv_sample(x_ref[perm_ref[n]], w_ref, b_ref)
            an = a_ref[n].astype(jnp.float32)            # (C_out, 1) channelwise coeff
            o_ref[n] = ((1.0 - an) * out1 + an * prev).astype(o_ref.dtype)

    return kernel


# ---------------------------- wrapper (glue) ----------------------------------
def feature_tuning_forward(x, w, b, tuning, a, perm, mixing_triggered, exp):
    """Replicates FeatureTuning.forward(x) with record=False (perturb pass)."""
    N, C_in, H, W = x.shape
    HW = H * W
    C_out = w.shape[0]
    beta = float(exp["ftm_beta"])

    # Free trailing-dim reshapes only (no transpose, no extra HBM pass).
    x3 = x.reshape(N, C_in, HW)
    t3 = tuning.reshape(N, C_out, HW)
    b2 = b.reshape(C_out, 1)

    vmem = pl.BlockSpec(memory_space=pltpu.MemorySpace.VMEM)
    smem = pl.BlockSpec(memory_space=pltpu.MemorySpace.SMEM)
    out_shape = jax.ShapeDtypeStruct((N, C_out, HW), jnp.float32)

    # hook gate: type(module)==Linear or output.size()[-1] <= input_size // divisor
    # TODO(synk): input_size=W mirrors the toy setup; re-check semantics for divisor > 1.
    input_size = W
    hook_active = W <= input_size // exp["divisor"]

    if not hook_active:
        out = pl.pallas_call(
            _make_fused_kernel(N, beta, "conv"),
            out_shape=out_shape,
            in_specs=[vmem, vmem, vmem],
            out_specs=vmem,
        )(x3, w, b2)
    elif mixing_triggered:
        out = pl.pallas_call(
            _make_fused_kernel(N, beta, "mix"),
            out_shape=out_shape,
            in_specs=[smem, vmem, vmem, vmem, vmem, vmem],
            out_specs=vmem,
        )(perm.astype(jnp.int32), x3, w, b2, t3, a.reshape(N, C_out, 1))
    else:
        # host-decided branch: slim kernel, no prev recompute / a / blend work
        out = pl.pallas_call(
            _make_fused_kernel(N, beta, "perturb"),
            out_shape=out_shape,
            in_specs=[vmem, vmem, vmem, vmem],
            out_specs=vmem,
        )(x3, w, b2, t3)

    return out.reshape(N, C_out, H, W)


# ---------------------------- pure-JAX reference -------------------------------
def reference(x, w, b, tuning, a, perm, beta, mixing_triggered):
    N = x.shape[0]
    y = jnp.einsum("oc,nchw->nohw", w, x,
                   precision=jax.lax.Precision.HIGHEST) + b[None, :, None, None]
    on = jnp.linalg.norm(y.reshape(N, -1), axis=1)
    tn = jnp.linalg.norm(tuning.reshape(N, -1), axis=1)
    scale = beta * on / (tn + 1e-7)
    out1 = y + tuning * scale[:, None, None, None]
    if not mixing_triggered:
        return out1
    prev = y[perm]
    a4 = a[:, :, None, None]
    return (1.0 - a4) * out1 + a4 * prev


# ------------------------------------------------------------------------------
if __name__ == "__main__":
    N, C_in, C_out, H, W = 2, 4, 8, 16, 16
    key = jax.random.PRNGKey(0)
    kx, kw, kb, kt, ka, kp, kc = jax.random.split(key, 7)

    x = jax.random.normal(kx, (N, C_in, H, W), dtype=jnp.float32)
    # deterministic Conv2d(4, 8, kernel_size=1) parameters
    w = jax.random.normal(kw, (C_out, C_in), dtype=jnp.float32) * 0.1
    b = jax.random.normal(kb, (C_out,), dtype=jnp.float32) * 0.1
    # outputs_tuning: zero-initialized in the record pass, then optimized by the
    # attack; here initialized to small nonzero deterministic values (synthetic).
    tuning = jax.random.normal(kt, (N, C_out, H, W), dtype=jnp.float32) * 0.05

    exp = EXP_SETTINGS
    mix_ratio = exp["mix_upper_bound_feature"] - exp["mix_lower_bound_feature"]
    # channelwise mix coefficients a ~ U * ratio + lower, shape (N, C)
    a = (jax.random.uniform(ka, (N, C_out), dtype=jnp.float32) * mix_ratio
         + exp["mix_lower_bound_feature"])
    # SelfShuffle batch permutation (host-side randperm in PyTorch)
    perm = jax.random.permutation(kp, N).astype(jnp.int32)
    # host-side mixing trigger (torch.rand(1).item() <= prob), prob=1.0 -> True
    c = float(jax.random.uniform(kc, ()))
    mixing_triggered = c <= exp["mix_prob"]

    out = feature_tuning_forward(x, w, b, tuning, a, perm, mixing_triggered, exp)
    out = jax.block_until_ready(out)

    ref = reference(x, w, b, tuning, a, perm, exp["ftm_beta"], mixing_triggered)
    # Tight f32 tolerance restored: the norm-ratio divide is now exact.
    np.testing.assert_allclose(np.asarray(out), np.asarray(ref),
                               rtol=5e-4, atol=5e-5)
    print("KERNEL_OK")
</pallas_src>

<mosaic_0001>
module attributes {stable_mosaic.version = 11 : i64} {
  func.func @kernel(%arg0: memref<2xi32, #tpu.memory_space<smem>>, %arg1: memref<2x4x256xf32, #tpu.memory_space<vmem>>, %arg2: memref<8x4xf32, #tpu.memory_space<vmem>>, %arg3: memref<8x1xf32, #tpu.memory_space<vmem>>, %arg4: memref<2x8x256xf32, #tpu.memory_space<vmem>>, %arg5: memref<2x8x1xf32, #tpu.memory_space<vmem>>, %arg6: memref<2x8x256xf32, #tpu.memory_space<vmem>>) attributes {dimension_semantics = [], scalar_prefetch = 0 : i64, scratch_operands = 0 : i64, tpu.core_type = #tpu.core_type<tc>} {
    %c0 = arith.constant 0 : index
    %c0_0 = arith.constant 0 : index
    %c0_1 = arith.constant 0 : index
    %0 = vector.load %arg1[%c0, %c0_0, %c0_1] : memref<2x4x256xf32, #tpu.memory_space<vmem>>, vector<1x4x256xf32>
    %1 = vector.shape_cast %0 : vector<1x4x256xf32> to vector<4x256xf32>
    %c0_2 = arith.constant 0 : index
    %c0_3 = arith.constant 0 : index
    %2 = vector.load %arg2[%c0_2, %c0_3] : memref<8x4xf32, #tpu.memory_space<vmem>>, vector<8x4xf32>
    %cst = arith.constant dense<0.000000e+00> : vector<8x256xf32>
    %3 = tpu.matmul %2, %1, %cst {dimension_numbers = #tpu.dot_dimension_numbers<[1], [0], [0], [1], [0, 0, 1, 1], [], []>} : vector<8x4xf32>, vector<4x256xf32>, vector<8x256xf32> -> vector<8x256xf32>
    %c0_4 = arith.constant 0 : index
    %c0_5 = arith.constant 0 : index
    %4 = vector.load %arg3[%c0_4, %c0_5] : memref<8x1xf32, #tpu.memory_space<vmem>>, vector<8x1xf32>
    %5 = vector.broadcast %4 : vector<8x1xf32> to vector<8x256xf32>
    %6 = arith.addf %3, %5 : vector<8x256xf32>
    %c0_6 = arith.constant 0 : index
    %c0_7 = arith.constant 0 : index
    %c0_8 = arith.constant 0 : index
    %7 = vector.load %arg4[%c0_6, %c0_7, %c0_8] : memref<2x8x256xf32, #tpu.memory_space<vmem>>, vector<1x8x256xf32>
    %8 = vector.shape_cast %7 : vector<1x8x256xf32> to vector<8x256xf32>
    %9 = arith.mulf %6, %6 : vector<8x256xf32>
    %10 = vector.shape_cast %9 : vector<8x256xf32> to vector<1x8x256xf32>
    %cst_9 = arith.constant dense<0.000000e+00> : vector<1xf32>
    %11 = vector.multi_reduction <add>, %10, %cst_9 [1, 2] : vector<1x8x256xf32> to vector<1xf32>
    %12 = vector.shape_cast %11 : vector<1xf32> to vector<1x1x1xf32>
    %13 = vector.extract %12[0, 0, 0] : f32 from vector<1x1x1xf32>
    %14 = vector.broadcast %13 : f32 to vector<1x1xf32>
    %15 = arith.mulf %8, %8 : vector<8x256xf32>
    %16 = vector.shape_cast %15 : vector<8x256xf32> to vector<1x8x256xf32>
    %cst_10 = arith.constant dense<0.000000e+00> : vector<1xf32>
    %17 = vector.multi_reduction <add>, %16, %cst_10 [1, 2] : vector<1x8x256xf32> to vector<1xf32>
    %18 = vector.shape_cast %17 : vector<1xf32> to vector<1x1x1xf32>
    %19 = vector.extract %18[0, 0, 0] : f32 from vector<1x1x1xf32>
    %20 = vector.broadcast %19 : f32 to vector<1x1xf32>
    %21 = math.sqrt %14 : vector<1x1xf32>
    %cst_11 = arith.constant 5.000000e-01 : f32
    %22 = vector.broadcast %cst_11 : f32 to vector<1x1xf32>
    %23 = arith.mulf %22, %21 : vector<1x1xf32>
    %24 = math.sqrt %20 : vector<1x1xf32>
    %cst_12 = arith.constant 1.000000e-07 : f32
    %25 = vector.broadcast %cst_12 : f32 to vector<1x1xf32>
    %26 = arith.addf %24, %25 : vector<1x1xf32>
    %27 = arith.divf %23, %26 : vector<1x1xf32>
    %28 = vector.broadcast %27 : vector<1x1xf32> to vector<8x256xf32>
    %29 = arith.mulf %8, %28 : vector<8x256xf32>
    %30 = arith.addf %6, %29 : vector<8x256xf32>
    %c0_13 = arith.constant 0 : index
    %31 = memref.load %arg0[%c0_13] : memref<2xi32, #tpu.memory_space<smem>>
    %32 = arith.index_cast %31 : i32 to index
    %c0_14 = arith.constant 0 : index
    %c0_15 = arith.constant 0 : index
    %33 = vector.load %arg1[%32, %c0_14, %c0_15] : memref<2x4x256xf32, #tpu.memory_space<vmem>>, vector<1x4x256xf32>
    %34 = vector.shape_cast %33 : vector<1x4x256xf32> to vector<4x256xf32>
    %c0_16 = arith.constant 0 : index
    %c0_17 = arith.constant 0 : index
    %35 = vector.load %arg2[%c0_16, %c0_17] : memref<8x4xf32, #tpu.memory_space<vmem>>, vector<8x4xf32>
    %cst_18 = arith.constant dense<0.000000e+00> : vector<8x256xf32>
    %36 = tpu.matmul %35, %34, %cst_18 {dimension_numbers = #tpu.dot_dimension_numbers<[1], [0], [0], [1], [0, 0, 1, 1], [], []>} : vector<8x4xf32>, vector<4x256xf32>, vector<8x256xf32> -> vector<8x256xf32>
    %c0_19 = arith.constant 0 : index
    %c0_20 = arith.constant 0 : index
    %37 = vector.load %arg3[%c0_19, %c0_20] : memref<8x1xf32, #tpu.memory_space<vmem>>, vector<8x1xf32>
    %38 = vector.broadcast %37 : vector<8x1xf32> to vector<8x256xf32>
    %39 = arith.addf %36, %38 : vector<8x256xf32>
    %c0_21 = arith.constant 0 : index
    %c0_22 = arith.constant 0 : index
    %c0_23 = arith.constant 0 : index
    %40 = vector.load %arg5[%c0_21, %c0_22, %c0_23] : memref<2x8x1xf32, #tpu.memory_space<vmem>>, vector<1x8x1xf32>
    %41 = vector.shape_cast %40 : vector<1x8x1xf32> to vector<8x1xf32>
    %cst_24 = arith.constant 1.000000e+00 : f32
    %42 = vector.broadcast %cst_24 : f32 to vector<8x1xf32>
    %43 = arith.subf %42, %41 : vector<8x1xf32>
    %44 = vector.broadcast %43 : vector<8x1xf32> to vector<8x256xf32>
    %45 = arith.mulf %44, %30 : vector<8x256xf32>
    %46 = vector.broadcast %41 : vector<8x1xf32> to vector<8x256xf32>
    %47 = arith.mulf %46, %39 : vector<8x256xf32>
    %48 = arith.addf %45, %47 : vector<8x256xf32>
    %c0_25 = arith.constant 0 : index
    %c0_26 = arith.constant 0 : index
    %c0_27 = arith.constant 0 : index
    %49 = vector.load %arg6[%c0_25, %c0_26, %c0_27] : memref<2x8x256xf32, #tpu.memory_space<vmem>>, vector<1x8x256xf32>
    %50 = vector.shape_cast %49 : vector<1x8x256xf32> to vector<8x256xf32>
    %51 = vector.shape_cast %48 : vector<8x256xf32> to vector<1x8x256xf32>
    tpu.vector_store %arg6[%c0_25, %c0_26, %c0_27], %51 {strides = array<i32>} : memref<2x8x256xf32, #tpu.memory_space<vmem>>, vector<1x8x256xf32>,
    %c1 = arith.constant 1 : index
    %c0_28 = arith.constant 0 : index
    %c0_29 = arith.constant 0 : index
    %52 = vector.load %arg1[%c1, %c0_28, %c0_29] : memref<2x4x256xf32, #tpu.memory_space<vmem>>, vector<1x4x256xf32>
    %53 = vector.shape_cast %52 : vector<1x4x256xf32> to vector<4x256xf32>
    %c0_30 = arith.constant 0 : index
    %c0_31 = arith.constant 0 : index
    %54 = vector.load %arg2[%c0_30, %c0_31] : memref<8x4xf32, #tpu.memory_space<vmem>>, vector<8x4xf32>
    %cst_32 = arith.constant dense<0.000000e+00> : vector<8x256xf32>
    %55 = tpu.matmul %54, %53, %cst_32 {dimension_numbers = #tpu.dot_dimension_numbers<[1], [0], [0], [1], [0, 0, 1, 1], [], []>} : vector<8x4xf32>, vector<4x256xf32>, vector<8x256xf32> -> vector<8x256xf32>
    %c0_33 = arith.constant 0 : index
    %c0_34 = arith.constant 0 : index
    %56 = vector.load %arg3[%c0_33, %c0_34] : memref<8x1xf32, #tpu.memory_space<vmem>>, vector<8x1xf32>
    %57 = vector.broadcast %56 : vector<8x1xf32> to vector<8x256xf32>
    %58 = arith.addf %55, %57 : vector<8x256xf32>
    %c1_35 = arith.constant 1 : index
    %c0_36 = arith.constant 0 : index
    %c0_37 = arith.constant 0 : index
    %59 = vector.load %arg4[%c1_35, %c0_36, %c0_37] : memref<2x8x256xf32, #tpu.memory_space<vmem>>, vector<1x8x256xf32>
    %60 = vector.shape_cast %59 : vector<1x8x256xf32> to vector<8x256xf32>
    %61 = arith.mulf %58, %58 : vector<8x256xf32>
    %62 = vector.shape_cast %61 : vector<8x256xf32> to vector<1x8x256xf32>
    %cst_38 = arith.constant dense<0.000000e+00> : vector<1xf32>
    %63 = vector.multi_reduction <add>, %62, %cst_38 [1, 2] : vector<1x8x256xf32> to vector<1xf32>
    %64 = vector.shape_cast %63 : vector<1xf32> to vector<1x1x1xf32>
    %65 = vector.extract %64[0, 0, 0] : f32 from vector<1x1x1xf32>
    %66 = vector.broadcast %65 : f32 to vector<1x1xf32>
    %67 = arith.mulf %60, %60 : vector<8x256xf32>
    %68 = vector.shape_cast %67 : vector<8x256xf32> to vector<1x8x256xf32>
    %cst_39 = arith.constant dense<0.000000e+00> : vector<1xf32>
    %69 = vector.multi_reduction <add>, %68, %cst_39 [1, 2] : vector<1x8x256xf32> to vector<1xf32>
    %70 = vector.shape_cast %69 : vector<1xf32> to vector<1x1x1xf32>
    %71 = vector.extract %70[0, 0, 0] : f32 from vector<1x1x1xf32>
    %72 = vector.broadcast %71 : f32 to vector<1x1xf32>
    %73 = math.sqrt %66 : vector<1x1xf32>
    %cst_40 = arith.constant 5.000000e-01 : f32
    %74 = vector.broadcast %cst_40 : f32 to vector<1x1xf32>
    %75 = arith.mulf %74, %73 : vector<1x1xf32>
    %76 = math.sqrt %72 : vector<1x1xf32>
    %cst_41 = arith.constant 1.000000e-07 : f32
    %77 = vector.broadcast %cst_41 : f32 to vector<1x1xf32>
    %78 = arith.addf %76, %77 : vector<1x1xf32>
    %79 = arith.divf %75, %78 : vector<1x1xf32>
    %80 = vector.broadcast %79 : vector<1x1xf32> to vector<8x256xf32>
    %81 = arith.mulf %60, %80 : vector<8x256xf32>
    %82 = arith.addf %58, %81 : vector<8x256xf32>
    %c1_42 = arith.constant 1 : index
    %83 = memref.load %arg0[%c1_42] : memref<2xi32, #tpu.memory_space<smem>>
    %84 = arith.index_cast %83 : i32 to index
    %c0_43 = arith.constant 0 : index
    %c0_44 = arith.constant 0 : index
    %85 = vector.load %arg1[%84, %c0_43, %c0_44] : memref<2x4x256xf32, #tpu.memory_space<vmem>>, vector<1x4x256xf32>
    %86 = vector.shape_cast %85 : vector<1x4x256xf32> to vector<4x256xf32>
    %c0_45 = arith.constant 0 : index
    %c0_46 = arith.constant 0 : index
    %87 = vector.load %arg2[%c0_45, %c0_46] : memref<8x4xf32, #tpu.memory_space<vmem>>, vector<8x4xf32>
    %cst_47 = arith.constant dense<0.000000e+00> : vector<8x256xf32>
    %88 = tpu.matmul %87, %86, %cst_47 {dimension_numbers = #tpu.dot_dimension_numbers<[1], [0], [0], [1], [0, 0, 1, 1], [], []>} : vector<8x4xf32>, vector<4x256xf32>, vector<8x256xf32> -> vector<8x256xf32>
    %c0_48 = arith.constant 0 : index
    %c0_49 = arith.constant 0 : index
    %89 = vector.load %arg3[%c0_48, %c0_49] : memref<8x1xf32, #tpu.memory_space<vmem>>, vector<8x1xf32>
    %90 = vector.broadcast %89 : vector<8x1xf32> to vector<8x256xf32>
    %91 = arith.addf %88, %90 : vector<8x256xf32>
    %c1_50 = arith.constant 1 : index
    %c0_51 = arith.constant 0 : index
    %c0_52 = arith.constant 0 : index
    %92 = vector.load %arg5[%c1_50, %c0_51, %c0_52] : memref<2x8x1xf32, #tpu.memory_space<vmem>>, vector<1x8x1xf32>
    %93 = vector.shape_cast %92 : vector<1x8x1xf32> to vector<8x1xf32>
    %cst_53 = arith.constant 1.000000e+00 : f32
    %94 = vector.broadcast %cst_53 : f32 to vector<8x1xf32>
    %95 = arith.subf %94, %93 : vector<8x1xf32>
    %96 = vector.broadcast %95 : vector<8x1xf32> to vector<8x256xf32>
    %97 = arith.mulf %96, %82 : vector<8x256xf32>
    %98 = vector.broadcast %93 : vector<8x1xf32> to vector<8x256xf32>
    %99 = arith.mulf %98, %91 : vector<8x256xf32>
    %100 = arith.addf %97, %99 : vector<8x256xf32>
    %c1_54 = arith.constant 1 : index
    %c0_55 = arith.constant 0 : index
    %c0_56 = arith.constant 0 : index
    %101 = vector.load %arg6[%c1_54, %c0_55, %c0_56] : memref<2x8x256xf32, #tpu.memory_space<vmem>>, vector<1x8x256xf32>
    %102 = vector.shape_cast %101 : vector<1x8x256xf32> to vector<8x256xf32>
    %103 = vector.shape_cast %100 : vector<8x256xf32> to vector<1x8x256xf32>
    tpu.vector_store %arg6[%c1_54, %c0_55, %c0_56], %103 {strides = array<i32>} : memref<2x8x256xf32, #tpu.memory_space<vmem>>, vector<1x8x256xf32>,
    return
  }
}

</mosaic_0001>

<llo_original>
// kernel: tpu_custom_call.1
$region0: #{tpu_custom_call.1}
  #allocation0 [shape = 'u32[]', space=smem, size = 0x4, offset = 0x4, fixed_abs, tag = 'smem constant byte address 0x4 - core index']
  #allocation1 [shape = 'u32[72,128]{1,0:T(1,128)}', space=vmem, size = 0x9000, scoped, tag = 'internal scratch']
  %s0 = inlined_call_operand.vmem [shape: s32[2], index: 0, kind: input, shape index: {}]
  %s1 = inlined_call_operand.vmem [shape: f32[2,4,256], index: 1, kind: input, shape index: {}]
  %s2 = inlined_call_operand.vmem [shape: f32[8,4], index: 2, kind: input, shape index: {}]
  %s3 = inlined_call_operand.vmem [shape: f32[8,1], index: 3, kind: input, shape index: {}]
  %s4 = inlined_call_operand.hbm [shape: f32[2,8,256], index: 4, kind: input, shape index: {}]
  %s5 = inlined_call_operand.vmem [shape: f32[2,8,1], index: 5, kind: input, shape index: {}]
  %s6 = inlined_call_operand.hbm [shape: f32[2,8,256], index: 6, kind: output, shape index: {}]
  %s7 = sld [smem:[#allocation0]]
  $region42: #{tpu_custom_call.1} parent=0
    _
  %s9 = ssub.s32 1, %s7
  %s10 = scalar_select 0, %s9, %s7
  $region1: #{tpu_custom_call.1} parent=0
    #allocation2 [shape = 'u8[512]{0}', space=smem, size = 0x200, scoped, tag = 'input window, operand 0, single buffered']
    #allocation3 [shape = 's32[1]{0}', space=sflag, size = 0x4, scoped, tag = 'scoped memory for tpu_custom_call.1']
    #allocation4 [shape = 's32[1]{0}', space=sflag, size = 0x4, scoped, tag = 'scoped memory for tpu_custom_call.1']
    #allocation5 [shape = 's32[1]{0}', space=sflag, size = 0x4, scoped, tag = 'scoped memory for tpu_custom_call.1']
    #allocation6 [shape = 'u8[16384]{0}', space=vmem, size = 0x4000, scoped, tag = 'input window, operand 4, single buffered']
    #allocation7 [shape = 'u8[16384]{0}', space=vmem, size = 0x4000, scoped, tag = 'output window, operand 0, single buffered']
    %11 = vsyncpa [#allocation5], 0
    %12 = vsyncpa [#allocation3], 0
    %13 = vsyncpa [#allocation4], 0
    // Predicated region
    $region2: #{tpu_custom_call.1} parent=1 // pred_check
      _
    $region3: #{tpu_custom_call.1} parent=1 // pred_check_branch
      %15 = sbr.rel (0) target = $region5
    $region4: #{tpu_custom_call.1} parent=1 // pred_region
      %17 = vsyncadd [#allocation5], 0
      %s19 = sshll.u32 %s0, 4
      %s20 = int_to_ptr.vmem [resolvable:$true] %s19
      %22 = dma.vmem_to_smem %s20, 16, [#allocation2], [#allocation5]
    $region5: #{tpu_custom_call.1} parent=1 // pred_fallthru
      _
    // Predicated region
    $region6: #{tpu_custom_call.1} parent=1 // pred_check
      _
    $region7: #{tpu_custom_call.1} parent=1 // pred_check_branch
      %24 = sbr.rel (0) target = $region9
    $region8: #{tpu_custom_call.1} parent=1 // pred_region
      _
    $region9: #{tpu_custom_call.1} parent=1 // pred_fallthru
      _
    // Predicated region
    $region10: #{tpu_custom_call.1} parent=1 // pred_check
      _
    $region11: #{tpu_custom_call.1} parent=1 // pred_check_branch
      %26 = sbr.rel (0) target = $region13
    $region12: #{tpu_custom_call.1} parent=1 // pred_region
      _
    $region13: #{tpu_custom_call.1} parent=1 // pred_fallthru
      _
    // Predicated region
    $region14: #{tpu_custom_call.1} parent=1 // pred_check
      _
    $region15: #{tpu_custom_call.1} parent=1 // pred_check_branch
      %28 = sbr.rel (0) target = $region17
    $region16: #{tpu_custom_call.1} parent=1 // pred_region
      _
    $region17: #{tpu_custom_call.1} parent=1 // pred_fallthru
      _
    // Predicated region
    $region18: #{tpu_custom_call.1} parent=1 // pred_check
      _
    $region19: #{tpu_custom_call.1} parent=1 // pred_check_branch
      %30 = sbr.rel (0) target = $region21
    $region20: #{tpu_custom_call.1} parent=1 // pred_region
      %32 = vsyncadd [#allocation3], 0
      %s33 = sshll.u32 %s4, 4
      %s34 = int_to_ptr.hbm [resolvable:$true] %s33
      %s35 = sshll.u32 [#allocation6], 4
      %s36 = int_to_ptr.vmem [resolvable:$true] %s35
      %41 = dma.hbm_to_vmem [thread:$0]  %s34, 512, %s36, [#allocation3], 256, 256, 16
    $region21: #{tpu_custom_call.1} parent=1 // pred_fallthru
      _
    // Predicated region
    $region22: #{tpu_custom_call.1} parent=1 // pred_check
      _
    $region23: #{tpu_custom_call.1} parent=1 // pred_check_branch
      %43 = sbr.rel (0) target = $region25
    $region24: #{tpu_custom_call.1} parent=1 // pred_region
      _
    $region25: #{tpu_custom_call.1} parent=1 // pred_fallthru
      _
    // Predicated region
    $region26: #{tpu_custom_call.1} parent=1 // pred_check
      _
    $region27: #{tpu_custom_call.1} parent=1 // pred_check_branch
      %45 = sbr.rel (0) target = $region29
    $region28: #{tpu_custom_call.1} parent=1 // pred_region
      %47 = dma.done [#allocation5], 16
    $region29: #{tpu_custom_call.1} parent=1 // pred_fallthru
      _
    // Predicated region
    $region30: #{tpu_custom_call.1} parent=1 // pred_check
      _
    $region31: #{tpu_custom_call.1} parent=1 // pred_check_branch
      %49 = sbr.rel (0) target = $region33
    $region32: #{tpu_custom_call.1} parent=1 // pred_region
      %51 = dma.done [#allocation3], 512
    $region33: #{tpu_custom_call.1} parent=1 // pred_fallthru
      _
    %52 = sfence
    %v53 = vld [vmem:[%s1] sm:$0xff]
    %v54 = vld [vmem:[%s2] sm:$0xff]
    %v55 = vld [vmem:[%s3] sm:$0xff]
    %57 = vset.pattern.permute.xlu0 0
    %58 = vperm.xlu0 %57, %v55
    %v59 = vpop.permute.xlu0 %58
    %62 = vst [vmem:[#allocation1] ss:$2 sm:$0xff] %v53
    %v63 = vld.sshfl [vmem:[#allocation1] sm:$0xff pattern:$0x75316420]
    %v64 = vld.sshfl [vmem:[#allocation1 + $0x8] sm:$0xff pattern:$0x75316420]
    %vm65 = vcmask 31744
    %v67 = vsel %vm65, %v54, 0
    %vm69 = vcmask 1043456
    %v70 = vsel %vm69, %v63, 0
    %v72 = vsel %vm69, %v64, 0
    %74 = vmatpush.msra.mxu0 0.0
    %75 = vmatpush.msra.mxu0 0.0
    %76 = vmatpush.msra.mxu0 0.0
    %77 = vmatpush.msra.mxu0 0.0
    %78 = vmatpush.msra.mxu0 0.0
    %79 = vmatpush.msra.mxu0 0.0
    %80 = vmatpush.msra.mxu0 0.0
    %81 = vmatpush.msra.mxu0 0.0
    %82 = vmatpush.msra.mxu0 0.0
    %83 = vmatpush.msra.mxu0 0.0
    %84 = vmatpush.msra.mxu0 0.0
    %85 = vmatpush.msra.mxu0 0.0
    %86 = vmatpush.msra.mxu0 0.0
    %87 = vmatpush.msra.mxu0 0.0
    %88 = vmatpush.msra.mxu0 0.0
    %89 = vmatpush.msra.mxu0 %v70
    %90 = vmatmul.f32.gmra.mxu0 %v67
    %v91 = vpop.f32.mrf.mxu0
    %v92 = vadd.f32 %v59, %v91
    %93 = vdwg.mxu0
    %94 = vmatpush.msra.mxu0 0.0
    %95 = vmatpush.msra.mxu0 0.0
    %96 = vmatpush.msra.mxu0 0.0
    %97 = vmatpush.msra.mxu0 0.0
    %98 = vmatpush.msra.mxu0 0.0
    %99 = vmatpush.msra.mxu0 0.0
    %100 = vmatpush.msra.mxu0 0.0
    %101 = vmatpush.msra.mxu0 0.0
    %102 = vmatpush.msra.mxu0 0.0
    %103 = vmatpush.msra.mxu0 0.0
    %104 = vmatpush.msra.mxu0 0.0
    %105 = vmatpush.msra.mxu0 0.0
    %106 = vmatpush.msra.mxu0 0.0
    %107 = vmatpush.msra.mxu0 0.0
    %108 = vmatpush.msra.mxu0 0.0
    %109 = vmatpush.msra.mxu0 %v72
    %110 = vmatmul.f32.gmra.mxu0 %v67
    %v111 = vpop.f32.mrf.mxu0
    %v112 = vadd.f32 %v59, %v111
    %113 = vdwg.mxu0
    %v114 = vld [vmem:[#allocation6] sm:$0xff]
    %v115 = vld [vmem:[#allocation6 + $0x8] sm:$0xff]
    %v116 = vmul.f32 %v92, %v92
    %v117 = vmul.f32 %v112, %v112
    %v118 = vadd.f32 %v116, %v117
    %119 = vadd.xlane.f32.xlu0 %v118
    %v120 = vpop.xlane.xlu0 %119
    %v121 = vrot.slane %v120, 4
    %v122 = vadd.f32 %v120, %v121
    %v123 = vrot.slane %v122, 2
    %v124 = vadd.f32 %v122, %v123
    %v125 = vrot.slane %v124, 1
    %v126 = vadd.f32 %v124, %v125
    %s127 = vtos %v126
    %v128 = vstv %s127
    %v129 = vmul.f32 %v114, %v114
    %v130 = vmul.f32 %v115, %v115
    %v131 = vadd.f32 %v129, %v130
    %132 = vadd.xlane.f32.xlu0 %v131
    %v133 = vpop.xlane.xlu0 %132
    %v134 = vrot.slane %v133, 4
    %v135 = vadd.f32 %v133, %v134
    %v136 = vrot.slane %v135, 2
    %v137 = vadd.f32 %v135, %v136
    %v138 = vrot.slane %v137, 1
    %v139 = vadd.f32 %v137, %v138
    %s140 = vtos %v139
    %v141 = vstv %s140
    %v142 = vrsqrt.pop %v128
    %v143 = vmul.f32 %v142, %v128
    %v144 = vmul.f32 %v143, %v142
    %v145 = vmul.f32 0.5, %v144
    %v146 = vsub.f32 1.5, %v145
    %v147 = vmul.f32 %v142, %v146
    %v148 = vmul.f32 %v128, %v147
    %vm149 = vcmp.eq.f32.partialorder %v128, inf
    %v150 = vsel %vm149, %v128, %v148
    %vm151 = vcmp.eq.f32.partialorder %v128, 0.0
    %v152 = vand.u32 %v128, 2147483648
    %v153 = vsel %vm151, %v152, %v150
    %v154 = vmul.f32 %v153, 0.5
    %v155 = vrsqrt.pop %v141
    %v156 = vmul.f32 %v155, %v141
    %v157 = vmul.f32 %v156, %v155
    %v158 = vmul.f32 0.5, %v157
    %v159 = vsub.f32 1.5, %v158
    %v160 = vmul.f32 %v155, %v159
    %v161 = vmul.f32 %v141, %v160
    %vm162 = vcmp.eq.f32.partialorder %v141, inf
    %v163 = vsel %vm162, %v141, %v161
    %vm164 = vcmp.eq.f32.partialorder %v141, 0.0
    %v165 = vand.u32 %v141, 2147483648
    %v166 = vsel %vm164, %v165, %v163
    %v167 = vadd.f32 %v166, 1e-07
    %v168 = vrcp.pop %v167
    %v169 = vmul.f32 %v167, %v168
    %v170 = vsub.f32 1.0, %v169
    %v171 = vmul.f32 %v168, %v170
    %v172 = vadd.f32 %v168, %v171
    %vm173 = vweird.f32 %v167
    %vm174 = vweird.f32 %v168
    %vm175 = vmor %vm173, %vm174
    %v176 = vsel %vm175, %v168, %v172
    %v177 = vand.u32 2147483647, %v167
    %vm178 = vcmp.eq.f32.partialorder %v177, 8.507059e+37
    %v179 = vand.u32 %v167, 2147483648
    %v180 = vor.u32 1.1754944e-38, %v179
    %v181 = vsel %vm178, %v180, %v176
    %v182 = vmul.f32 %v154, %v181
    %v183 = vmul.f32 %v114, %v182
    %v184 = vmul.f32 %v115, %v182
    %v185 = vadd.f32 %v92, %v183
    %v186 = vadd.f32 %v112, %v184
    %s187 = sld [smem:[#allocation2]]
    %s188 = smul.u32 %s187, 2
    %s189 = smul.addr %s188, 4
    %s190 = scalar_lea.vmem %s1, %s189
    %v191 = vld [vmem:[%s190] sm:$0xff]
    %193 = vst [vmem:[#allocation1] ss:$2 sm:$0xff] %v191
    %v194 = vld.sshfl [vmem:[#allocation1] sm:$0xff pattern:$0x75316420]
    %v195 = vld.sshfl [vmem:[#allocation1 + $0x8] sm:$0xff pattern:$0x75316420]
    %v196 = vsel %vm69, %v194, 0
    %v198 = vsel %vm69, %v195, 0
    %200 = vmatpush.msra.mxu0 0.0
    %201 = vmatpush.msra.mxu0 0.0
    %202 = vmatpush.msra.mxu0 0.0
    %203 = vmatpush.msra.mxu0 0.0
    %204 = vmatpush.msra.mxu0 0.0
    %205 = vmatpush.msra.mxu0 0.0
    %206 = vmatpush.msra.mxu0 0.0
    %207 = vmatpush.msra.mxu0 0.0
    %208 = vmatpush.msra.mxu0 0.0
    %209 = vmatpush.msra.mxu0 0.0
    %210 = vmatpush.msra.mxu0 0.0
    %211 = vmatpush.msra.mxu0 0.0
    %212 = vmatpush.msra.mxu0 0.0
    %213 = vmatpush.msra.mxu0 0.0
    %214 = vmatpush.msra.mxu0 0.0
    %215 = vmatpush.msra.mxu0 %v196
    %216 = vmatmul.f32.gmra.mxu0 %v67
    %v217 = vpop.f32.mrf.mxu0
    %v218 = vadd.f32 %v59, %v217
    %219 = vdwg.mxu0
    %220 = vmatpush.msra.mxu0 0.0
    %221 = vmatpush.msra.mxu0 0.0
    %222 = vmatpush.msra.mxu0 0.0
    %223 = vmatpush.msra.mxu0 0.0
    %224 = vmatpush.msra.mxu0 0.0
    %225 = vmatpush.msra.mxu0 0.0
    %226 = vmatpush.msra.mxu0 0.0
    %227 = vmatpush.msra.mxu0 0.0
    %228 = vmatpush.msra.mxu0 0.0
    %229 = vmatpush.msra.mxu0 0.0
    %230 = vmatpush.msra.mxu0 0.0
    %231 = vmatpush.msra.mxu0 0.0
    %232 = vmatpush.msra.mxu0 0.0
    %233 = vmatpush.msra.mxu0 0.0
    %234 = vmatpush.msra.mxu0 0.0
    %235 = vmatpush.msra.mxu0 %v198
    %236 = vmatmul.f32.gmra.mxu0 %v67
    %v237 = vpop.f32.mrf.mxu0
    %v238 = vadd.f32 %v59, %v237
    %239 = vdwg.mxu0
    %v240 = vld [vmem:[%s5] sm:$0xff]
    %v241 = vsub.f32 1.0, %v240
    %243 = vset.pattern.permute.xlu0 0
    %244 = vperm.xlu0 %243, %v241
    %v245 = vpop.permute.xlu0 %244
    %v247 = vmul.f32 %v245, %v185
    %v248 = vmul.f32 %v245, %v186
    %250 = vset.pattern.permute.xlu0 0
    %251 = vperm.xlu0 %250, %v240
    %v252 = vpop.permute.xlu0 %251
    %v254 = vmul.f32 %v252, %v218
    %v255 = vmul.f32 %v252, %v238
    %v256 = vadd.f32 %v247, %v254
    %v257 = vadd.f32 %v248, %v255
    %258 = vst [vmem:[#allocation7] sm:$0xff] %v256
    %259 = vst [vmem:[#allocation7 + $0x8] sm:$0xff] %v257
    %s260 = scalar_lea.vmem %s1, 8
    %v261 = vld [vmem:[%s260] sm:$0xff]
    %v262 = vld [vmem:[%s2] sm:$0xff]
    %v263 = vld [vmem:[%s3] sm:$0xff]
    %265 = vset.pattern.permute.xlu0 0
    %266 = vperm.xlu0 %265, %v263
    %v267 = vpop.permute.xlu0 %266
    %270 = vst [vmem:[#allocation1] ss:$2 sm:$0xff] %v261
    %v271 = vld.sshfl [vmem:[#allocation1] sm:$0xff pattern:$0x75316420]
    %v272 = vld.sshfl [vmem:[#allocation1 + $0x8] sm:$0xff pattern:$0x75316420]
    %v274 = vsel %vm65, %v262, 0
    %v276 = vsel %vm69, %v271, 0
    %v278 = vsel %vm69, %v272, 0
    %280 = vmatpush.msra.mxu0 0.0
    %281 = vmatpush.msra.mxu0 0.0
    %282 = vmatpush.msra.mxu0 0.0
    %283 = vmatpush.msra.mxu0 0.0
    %284 = vmatpush.msra.mxu0 0.0
    %285 = vmatpush.msra.mxu0 0.0
    %286 = vmatpush.msra.mxu0 0.0
    %287 = vmatpush.msra.mxu0 0.0
    %288 = vmatpush.msra.mxu0 0.0
    %289 = vmatpush.msra.mxu0 0.0
    %290 = vmatpush.msra.mxu0 0.0
    %291 = vmatpush.msra.mxu0 0.0
    %292 = vmatpush.msra.mxu0 0.0
    %293 = vmatpush.msra.mxu0 0.0
    %294 = vmatpush.msra.mxu0 0.0
    %295 = vmatpush.msra.mxu0 %v276
    %296 = vmatmul.f32.gmra.mxu0 %v274
    %v297 = vpop.f32.mrf.mxu0
    %v298 = vadd.f32 %v267, %v297
    %299 = vdwg.mxu0
    %300 = vmatpush.msra.mxu0 0.0
    %301 = vmatpush.msra.mxu0 0.0
    %302 = vmatpush.msra.mxu0 0.0
    %303 = vmatpush.msra.mxu0 0.0
    %304 = vmatpush.msra.mxu0 0.0
    %305 = vmatpush.msra.mxu0 0.0
    %306 = vmatpush.msra.mxu0 0.0
    %307 = vmatpush.msra.mxu0 0.0
    %308 = vmatpush.msra.mxu0 0.0
    %309 = vmatpush.msra.mxu0 0.0
    %310 = vmatpush.msra.mxu0 0.0
    %311 = vmatpush.msra.mxu0 0.0
    %312 = vmatpush.msra.mxu0 0.0
    %313 = vmatpush.msra.mxu0 0.0
    %314 = vmatpush.msra.mxu0 0.0
    %315 = vmatpush.msra.mxu0 %v278
    %316 = vmatmul.f32.gmra.mxu0 %v274
    %v317 = vpop.f32.mrf.mxu0
    %v318 = vadd.f32 %v267, %v317
    %319 = vdwg.mxu0
    %s320 = scalar_lea.vmem [#allocation6], 16
    %v321 = vld [vmem:[%s320] sm:$0xff]
    %v322 = vld [vmem:[%s320 + $0x8] sm:$0xff]
    %v323 = vmul.f32 %v298, %v298
    %v324 = vmul.f32 %v318, %v318
    %v325 = vadd.f32 %v323, %v324
    %326 = vadd.xlane.f32.xlu0 %v325
    %v327 = vpop.xlane.xlu0 %326
    %v328 = vrot.slane %v327, 4
    %v329 = vadd.f32 %v327, %v328
    %v330 = vrot.slane %v329, 2
    %v331 = vadd.f32 %v329, %v330
    %v332 = vrot.slane %v331, 1
    %v333 = vadd.f32 %v331, %v332
    %s334 = vtos %v333
    %v335 = vstv %s334
    %v336 = vmul.f32 %v321, %v321
    %v337 = vmul.f32 %v322, %v322
    %v338 = vadd.f32 %v336, %v337
    %339 = vadd.xlane.f32.xlu0 %v338
    %v340 = vpop.xlane.xlu0 %339
    %v341 = vrot.slane %v340, 4
    %v342 = vadd.f32 %v340, %v341
    %v343 = vrot.slane %v342, 2
    %v344 = vadd.f32 %v342, %v343
    %v345 = vrot.slane %v344, 1
    %v346 = vadd.f32 %v344, %v345
    %s347 = vtos %v346
    %v348 = vstv %s347
    %v349 = vrsqrt.pop %v335
    %v350 = vmul.f32 %v349, %v335
    %v351 = vmul.f32 %v350, %v349
    %v352 = vmul.f32 0.5, %v351
    %v353 = vsub.f32 1.5, %v352
    %v354 = vmul.f32 %v349, %v353
    %v355 = vmul.f32 %v335, %v354
    %vm356 = vcmp.eq.f32.partialorder %v335, inf
    %v357 = vsel %vm356, %v335, %v355
    %vm358 = vcmp.eq.f32.partialorder %v335, 0.0
    %v359 = vand.u32 %v335, 2147483648
    %v360 = vsel %vm358, %v359, %v357
    %v361 = vmul.f32 %v360, 0.5
    %v362 = vrsqrt.pop %v348
    %v363 = vmul.f32 %v362, %v348
    %v364 = vmul.f32 %v363, %v362
    %v365 = vmul.f32 0.5, %v364
    %v366 = vsub.f32 1.5, %v365
    %v367 = vmul.f32 %v362, %v366
    %v368 = vmul.f32 %v348, %v367
    %vm369 = vcmp.eq.f32.partialorder %v348, inf
    %v370 = vsel %vm369, %v348, %v368
    %vm371 = vcmp.eq.f32.partialorder %v348, 0.0
    %v372 = vand.u32 %v348, 2147483648
    %v373 = vsel %vm371, %v372, %v370
    %v374 = vadd.f32 %v373, 1e-07
    %v375 = vrcp.pop %v374
    %v376 = vmul.f32 %v374, %v375
    %v377 = vsub.f32 1.0, %v376
    %v378 = vmul.f32 %v375, %v377
    %v379 = vadd.f32 %v375, %v378
    %vm380 = vweird.f32 %v374
    %vm381 = vweird.f32 %v375
    %vm382 = vmor %vm380, %vm381
    %v383 = vsel %vm382, %v375, %v379
    %v384 = vand.u32 2147483647, %v374
    %vm385 = vcmp.eq.f32.partialorder %v384, 8.507059e+37
    %v386 = vand.u32 %v374, 2147483648
    %v387 = vor.u32 1.1754944e-38, %v386
    %v388 = vsel %vm385, %v387, %v383
    %v389 = vmul.f32 %v361, %v388
    %v390 = vmul.f32 %v321, %v389
    %v391 = vmul.f32 %v322, %v389
    %v392 = vadd.f32 %v298, %v390
    %v393 = vadd.f32 %v318, %v391
    %s394 = sld [smem:[#allocation2 + $0x1]]
    %s395 = smul.u32 %s394, 2
    %s396 = smul.addr %s395, 4
    %s397 = scalar_lea.vmem %s1, %s396
    %v398 = vld [vmem:[%s397] sm:$0xff]
    %400 = vst [vmem:[#allocation1] ss:$2 sm:$0xff] %v398
    %v401 = vld.sshfl [vmem:[#allocation1] sm:$0xff pattern:$0x75316420]
    %v402 = vld.sshfl [vmem:[#allocation1 + $0x8] sm:$0xff pattern:$0x75316420]
    %v403 = vsel %vm69, %v401, 0
    %v405 = vsel %vm69, %v402, 0
    %407 = vmatpush.msra.mxu0 0.0
    %408 = vmatpush.msra.mxu0 0.0
    %409 = vmatpush.msra.mxu0 0.0
    %410 = vmatpush.msra.mxu0 0.0
    %411 = vmatpush.msra.mxu0 0.0
    %412 = vmatpush.msra.mxu0 0.0
    %413 = vmatpush.msra.mxu0 0.0
    %414 = vmatpush.msra.mxu0 0.0
    %415 = vmatpush.msra.mxu0 0.0
    %416 = vmatpush.msra.mxu0 0.0
    %417 = vmatpush.msra.mxu0 0.0
    %418 = vmatpush.msra.mxu0 0.0
    %419 = vmatpush.msra.mxu0 0.0
    %420 = vmatpush.msra.mxu0 0.0
    %421 = vmatpush.msra.mxu0 0.0
    %422 = vmatpush.msra.mxu0 %v403
    %423 = vmatmul.f32.gmra.mxu0 %v274
    %v424 = vpop.f32.mrf.mxu0
    %v425 = vadd.f32 %v267, %v424
    %426 = vdwg.mxu0
    %427 = vmatpush.msra.mxu0 0.0
    %428 = vmatpush.msra.mxu0 0.0
    %429 = vmatpush.msra.mxu0 0.0
    %430 = vmatpush.msra.mxu0 0.0
    %431 = vmatpush.msra.mxu0 0.0
    %432 = vmatpush.msra.mxu0 0.0
    %433 = vmatpush.msra.mxu0 0.0
    %434 = vmatpush.msra.mxu0 0.0
    %435 = vmatpush.msra.mxu0 0.0
    %436 = vmatpush.msra.mxu0 0.0
    %437 = vmatpush.msra.mxu0 0.0
    %438 = vmatpush.msra.mxu0 0.0
    %439 = vmatpush.msra.mxu0 0.0
    %440 = vmatpush.msra.mxu0 0.0
    %441 = vmatpush.msra.mxu0 0.0
    %442 = vmatpush.msra.mxu0 %v405
    %443 = vmatmul.f32.gmra.mxu0 %v274
    %v444 = vpop.f32.mrf.mxu0
    %v445 = vadd.f32 %v267, %v444
    %446 = vdwg.mxu0
    %s447 = scalar_lea.vmem %s5, 8
    %v448 = vld [vmem:[%s447] sm:$0xff]
    %v449 = vsub.f32 1.0, %v448
    %451 = vset.pattern.permute.xlu0 0
    %452 = vperm.xlu0 %451, %v449
    %v453 = vpop.permute.xlu0 %452
    %v455 = vmul.f32 %v453, %v392
    %v456 = vmul.f32 %v453, %v393
    %458 = vset.pattern.permute.xlu0 0
    %459 = vperm.xlu0 %458, %v448
    %v460 = vpop.permute.xlu0 %459
    %v462 = vmul.f32 %v460, %v425
    %v463 = vmul.f32 %v460, %v445
    %v464 = vadd.f32 %v455, %v462
    %v465 = vadd.f32 %v456, %v463
    %s466 = scalar_lea.vmem [#allocation7], 16
    %467 = vst [vmem:[%s466] sm:$0xff] %v464
    %468 = vst [vmem:[%s466 + $0x8] sm:$0xff] %v465
    // Predicated region
    $region34: #{tpu_custom_call.1} parent=1 // pred_check
      _
    $region35: #{tpu_custom_call.1} parent=1 // pred_check_branch
      %470 = sbr.rel (0) target = $region37
    $region36: #{tpu_custom_call.1} parent=1 // pred_region
      %472 = vsyncadd [#allocation4], 0
      %s473 = sshll.u32 [#allocation7], 4
      %s474 = int_to_ptr.vmem [resolvable:$true] %s473
      %s475 = sshll.u32 %s6, 4
      %s476 = int_to_ptr.hbm [resolvable:$true] %s475
      %481 = dma.vmem_to_hbm [thread:$0]  %s474, 512, %s476, [#allocation4], 256, 256, 16
    $region37: #{tpu_custom_call.1} parent=1 // pred_fallthru
      _
    // Predicated region
    $region38: #{tpu_custom_call.1} parent=1 // pred_check
      _
    $region39: #{tpu_custom_call.1} parent=1 // pred_check_branch
      %483 = sbr.rel (0) target = $region41
    $region40: #{tpu_custom_call.1} parent=1 // pred_region
      %485 = dma.done [#allocation4], 512
    $region41: #{tpu_custom_call.1} parent=1 // pred_fallthru
      _
    %486 = vsyncpa [#allocation3], 1
    %487 = vsyncpa [#allocation4], 1
    %488 = vsyncpa [#allocation5], 1

</llo_original>
